<compile_context>
chip_gen: v7x
topology: tpu7x:2x2x1
jax: 0.10.0
libtpu: 0.0.40
codegen_flags: <defaults>
</compile_context>

<pallas_src>
import functools

import jax
import jax.numpy as jnp
from jax import lax
from jax.experimental import pallas as pl
from jax.experimental.pallas import tpu as pltpu


def _round_up(x, m):
    return ((x + m - 1) // m) * m


def _fused_kernel(c_ref, w_ref, b_ref, o_ref):
    # One MXU matmul per batch tile; bias broadcast-add + cast on the VPU.
    o_ref[...] = (
        jnp.dot(c_ref[...], w_ref[...], preferred_element_type=jnp.float32)
        + b_ref[...]
    ).astype(o_ref.dtype)


def _pick_batch_tile(B, Dp, max_tile=512, budget_bytes=16 << 20):
    """Largest sublane-aligned batch tile whose double-buffered in/out tiles
    fit the VMEM budget (weight/bias are accounted separately by caller)."""
    tb = min(max_tile, _round_up(B, 8))
    # 2 buffers for the context tile + 2 for the output tile, f32.
    while tb > 8 and 4 * tb * Dp * 4 > budget_bytes:
        tb //= 2
    return max(8, _round_up(tb, 8))


@functools.partial(jax.jit, static_argnames=("batch_tile",))
def cross_modal_attention(query_feat, context_feat, params, *, batch_tile=512):
    """Pallas implementation of CrossModalAttention.forward.

    query_feat:   (B, D) float32  (provably does not affect the output when
                                   seq_len == 1: softmax over one key == 1.0)
    context_feat: (B, D) float32
    params: dict with in_proj_weight (3D, D), in_proj_bias (3D,),
            out_proj_weight (D, D), out_proj_bias (D,)  -- PyTorch layout.
    returns: (B, D) float32
    """
    del query_feat  # dead input under seq_len == 1 attention algebra
    B, D = context_feat.shape
    f32 = jnp.float32

    w_in = params["in_proj_weight"]            # (3D, D), rows = output features
    b_in = params["in_proj_bias"]              # (3D,)
    wv = w_in[2 * D:]                          # (D, D)  value projection
    bv = b_in[2 * D:]                          # (D,)
    wo = params["out_proj_weight"]             # (D, D)  output projection
    bo = params["out_proj_bias"]               # (D,)

    # Host-side fold (one-time per call):
    #   W_eff[i, p] = sum_o Wv[o, i] * Wo[p, o]      (input-dim -> output-dim)
    #   b_eff[p]    = sum_o bv[o]   * Wo[p, o] + bo[p]
    hp = lax.Precision.HIGHEST
    w_eff = jnp.einsum("oi,po->ip", wv, wo, precision=hp).astype(f32)
    b_eff = (jnp.einsum("o,po->p", bv, wo, precision=hp) + bo).astype(f32)

    # Lane/sublane-friendly padding: features to a multiple of 128 (lane-dense
    # unmasked output stores), batch to a multiple of the batch tile.
    Dp = _round_up(D, 128)
    TB = _pick_batch_tile(B, Dp, max_tile=batch_tile)
    Bp = _round_up(B, TB)

    c_f32 = context_feat.astype(f32)
    if (Bp, Dp) == (B, D):
        c_pad = c_f32
    else:
        c_pad = jnp.zeros((Bp, Dp), f32).at[:B, :D].set(c_f32)
    if Dp == D:
        w_pad = w_eff
        b_pad = b_eff[None, :]
    else:
        w_pad = jnp.zeros((Dp, Dp), f32).at[:D, :D].set(w_eff)
        b_pad = jnp.zeros((1, Dp), f32).at[0, :D].set(b_eff)

    # VMEM accounting (f32): double-buffered context + output tiles, weight
    # and bias (constant index_map, still 2 buffers each), plus headroom.
    vmem_bytes = 4 * (4 * TB * Dp + 2 * Dp * Dp + 2 * Dp) + (4 << 20)
    vmem_bytes = min(vmem_bytes, 100 << 20)

    out = pl.pallas_call(
        _fused_kernel,
        out_shape=jax.ShapeDtypeStruct((Bp, Dp), f32),
        grid_spec=pltpu.PrefetchScalarGridSpec(
            num_scalar_prefetch=0,
            grid=(Bp // TB,),
            in_specs=[
                pl.BlockSpec((TB, Dp), lambda i: (i, 0)),   # context batch tile
                pl.BlockSpec((Dp, Dp), lambda i: (0, 0)),   # folded weight (VMEM-resident)
                pl.BlockSpec((1, Dp), lambda i: (0, 0)),    # folded bias   (VMEM-resident)
            ],
            out_specs=pl.BlockSpec((TB, Dp), lambda i: (i, 0)),
        ),
        compiler_params=pltpu.CompilerParams(
            dimension_semantics=("parallel",),  # batch tiles shard across TCs on v7x
            vmem_limit_bytes=int(vmem_bytes),
        ),
    )(c_pad, w_pad, b_pad)

    if (Bp, Dp) == (B, D):
        return out
    return out[:B, :D]


def _reference(query_feat, context_feat, params):
    """Pure-JAX reference of torch.nn.MultiheadAttention (1 head, seq_len=1),
    computed with the FULL q/k/v + softmax math for verification."""
    B, D = query_feat.shape
    hp = lax.Precision.HIGHEST
    w_in, b_in = params["in_proj_weight"], params["in_proj_bias"]
    wq, wk, wv = w_in[:D], w_in[D:2 * D], w_in[2 * D:]
    bq, bk, bv = b_in[:D], b_in[D:2 * D], b_in[2 * D:]
    q = jnp.dot(query_feat, wq.T, precision=hp) + bq
    k = jnp.dot(context_feat, wk.T, precision=hp) + bk
    v = jnp.dot(context_feat, wv.T, precision=hp) + bv
    scores = jnp.sum(q * k, axis=-1, keepdims=True) / jnp.sqrt(jnp.float32(D))
    attn = jax.nn.softmax(scores, axis=-1)        # single key -> exactly 1.0
    out = attn * v
    return jnp.dot(out, params["out_proj_weight"].T, precision=hp) + params["out_proj_bias"]


def init_params(key, D):
    """Deterministic synthetic init mirroring nn.MultiheadAttention shapes."""
    k1, k2 = jax.random.split(key)
    bound = (6.0 / (D + D)) ** 0.5                # xavier_uniform-like
    in_proj_weight = jax.random.uniform(k1, (3 * D, D), jnp.float32, -bound, bound)
    in_proj_bias = jnp.zeros((3 * D,), jnp.float32)
    out_proj_weight = jax.random.uniform(k2, (D, D), jnp.float32, -bound, bound)
    out_proj_bias = jnp.zeros((D,), jnp.float32)
    return dict(in_proj_weight=in_proj_weight, in_proj_bias=in_proj_bias,
                out_proj_weight=out_proj_weight, out_proj_bias=out_proj_bias)


if __name__ == "__main__":
    B, D = 2, 32
    key = jax.random.PRNGKey(0)
    kq, kc, kp = jax.random.split(key, 3)

    query_feat = jax.random.normal(kq, (B, D), jnp.float32)
    context_feat = jax.random.normal(kc, (B, D), jnp.float32)
    params = init_params(kp, D)

    out = cross_modal_attention(query_feat, context_feat, params)
    out = jax.block_until_ready(out)

    ref = _reference(query_feat, context_feat, params)
    assert out.shape == (B, D)
    assert jnp.allclose(out, ref, atol=1e-4, rtol=1e-4), "mismatch vs reference"

    print("KERNEL_OK")
</pallas_src>

<mosaic_0001>
module attributes {stable_mosaic.version = 11 : i64} {
  func.func @_fused_kernel(%arg0: i32, %arg1: memref<8x128xf32, #tpu.memory_space<vmem>>, %arg2: memref<128x128xf32, #tpu.memory_space<vmem>>, %arg3: memref<1x128xf32, #tpu.memory_space<vmem>>, %arg4: memref<8x128xf32, #tpu.memory_space<vmem>>) attributes {dimension_semantics = [#tpu.dimension_semantics<parallel>], iteration_bounds = array<i64: 1>, scalar_prefetch = 0 : i64, scratch_operands = 0 : i64, tpu.core_type = #tpu.core_type<tc>, window_params = [{transform_indices = @transform_0, window_bounds = array<i64: 8, 128>}, {pipeline_mode = #tpu.pipeline_mode<synchronous>, transform_indices = @transform_1, window_bounds = array<i64: 128, 128>}, {pipeline_mode = #tpu.pipeline_mode<synchronous>, transform_indices = @transform_2, window_bounds = array<i64: 1, 128>}, {transform_indices = @transform_3, window_bounds = array<i64: 8, 128>}]} {
    %c0 = arith.constant 0 : index
    %c0_0 = arith.constant 0 : index
    %0 = vector.load %arg1[%c0, %c0_0] : memref<8x128xf32, #tpu.memory_space<vmem>>, vector<8x128xf32>
    %c0_1 = arith.constant 0 : index
    %c0_2 = arith.constant 0 : index
    %1 = vector.load %arg2[%c0_1, %c0_2] : memref<128x128xf32, #tpu.memory_space<vmem>>, vector<128x128xf32>
    %cst = arith.constant dense<0.000000e+00> : vector<8x128xf32>
    %2 = tpu.matmul %0, %1, %cst {dimension_numbers = #tpu.dot_dimension_numbers<[1], [0], [0], [1], [0, 0, 1, 1], [], []>} : vector<8x128xf32>, vector<128x128xf32>, vector<8x128xf32> -> vector<8x128xf32>
    %c0_3 = arith.constant 0 : index
    %c0_4 = arith.constant 0 : index
    %3 = vector.load %arg3[%c0_3, %c0_4] : memref<1x128xf32, #tpu.memory_space<vmem>>, vector<1x128xf32>
    %4 = vector.broadcast %3 : vector<1x128xf32> to vector<8x128xf32>
    %5 = arith.addf %2, %4 : vector<8x128xf32>
    %c0_5 = arith.constant 0 : index
    %c0_6 = arith.constant 0 : index
    %6 = vector.load %arg4[%c0_5, %c0_6] : memref<8x128xf32, #tpu.memory_space<vmem>>, vector<8x128xf32>
    tpu.vector_store %arg4[%c0_5, %c0_6], %5 {strides = array<i32>} : memref<8x128xf32, #tpu.memory_space<vmem>>, vector<8x128xf32>,
    return
  }
  func.func @transform_0(%arg0: i32) -> (i32, i32) {
    %c0_i32 = arith.constant 0 : i32
    %c0_i32_0 = arith.constant 0 : i32
    return %arg0, %c0_i32 : i32, i32
  }
  func.func @transform_1(%arg0: i32) -> (i32, i32) {
    %c0_i32 = arith.constant 0 : i32
    %c0_i32_0 = arith.constant 0 : i32
    %c0_i32_1 = arith.constant 0 : i32
    return %c0_i32, %c0_i32_0 : i32, i32
  }
  func.func @transform_2(%arg0: i32) -> (i32, i32) {
    %c0_i32 = arith.constant 0 : i32
    %c0_i32_0 = arith.constant 0 : i32
    %c0_i32_1 = arith.constant 0 : i32
    return %c0_i32, %c0_i32_0 : i32, i32
  }
  func.func @transform_3(%arg0: i32) -> (i32, i32) {
    %c0_i32 = arith.constant 0 : i32
    %c0_i32_0 = arith.constant 0 : i32
    return %arg0, %c0_i32 : i32, i32
  }
}

</mosaic_0001>

<llo_original>
// kernel: cross_modal_attention.1
$region0: #{cross_modal_attention.1}
  #allocation0 [shape = 'u32[]', space=smem, size = 0x4, offset = 0x4, fixed_abs, tag = 'smem constant byte address 0x4 - core index']
  #allocation1 [shape = 'u32[144,128]{1,0:T(1,128)}', space=vmem, size = 0x12000, scoped, tag = 'internal scratch']
  %s0 = inlined_call_operand.vmem [shape: f32[8,128], index: 0, kind: input, shape index: {}]
  %s1 = inlined_call_operand.vmem [shape: f32[128,128], index: 1, kind: input, shape index: {}]
  %s2 = inlined_call_operand.vmem [shape: f32[1,128], index: 2, kind: input, shape index: {}]
  %s3 = inlined_call_operand.vmem [shape: f32[8,128], index: 3, kind: output, shape index: {}]
  %s4 = sld [smem:[#allocation0]]
  $region22: #{cross_modal_attention.1} parent=0
    _
  %s6 = ssub.s32 1, %s4
  %s7 = scalar_select 0, %s6, %s4
  // Predicated region
  $region2: #{cross_modal_attention.1} parent=0 // pred_check
    _
  $region3: #{cross_modal_attention.1} parent=0 // pred_check_branch
    %9 = sbr.rel (0) target = $region5
  $region4: #{cross_modal_attention.1} parent=0 // pred_region
    _
  $region5: #{cross_modal_attention.1} parent=0 // pred_fallthru
    _
  // Predicated region
  $region6: #{cross_modal_attention.1} parent=0 // pred_check
    _
  $region7: #{cross_modal_attention.1} parent=0 // pred_check_branch
    %11 = sbr.rel (0) target = $region9
  $region8: #{cross_modal_attention.1} parent=0 // pred_region
    _
  $region9: #{cross_modal_attention.1} parent=0 // pred_fallthru
    _
  // Predicated region
  $region10: #{cross_modal_attention.1} parent=0 // pred_check
    _
  $region11: #{cross_modal_attention.1} parent=0 // pred_check_branch
    %13 = sbr.rel (0) target = $region13
  $region12: #{cross_modal_attention.1} parent=0 // pred_region
    _
  $region13: #{cross_modal_attention.1} parent=0 // pred_fallthru
    _
  %v14 = vld [vmem:[%s0] sm:$0xff]
  %v15 = vld [vmem:[%s1] sm:$0xff]
  %v16 = vld [vmem:[%s1 + $0x8] sm:$0xff]
  %v17 = vld [vmem:[%s1 + $0x10] sm:$0xff]
  %v18 = vld [vmem:[%s1 + $0x18] sm:$0xff]
  %v19 = vld [vmem:[%s1 + $0x20] sm:$0xff]
  %v20 = vld [vmem:[%s1 + $0x28] sm:$0xff]
  %v21 = vld [vmem:[%s1 + $0x30] sm:$0xff]
  %v22 = vld [vmem:[%s1 + $0x38] sm:$0xff]
  %v23 = vld [vmem:[%s1 + $0x40] sm:$0xff]
  %v24 = vld [vmem:[%s1 + $0x48] sm:$0xff]
  %v25 = vld [vmem:[%s1 + $0x50] sm:$0xff]
  %v26 = vld [vmem:[%s1 + $0x58] sm:$0xff]
  %v27 = vld [vmem:[%s1 + $0x60] sm:$0xff]
  %v28 = vld [vmem:[%s1 + $0x68] sm:$0xff]
  %v29 = vld [vmem:[%s1 + $0x70] sm:$0xff]
  %v30 = vld [vmem:[%s1 + $0x78] sm:$0xff]
  %v31 = vld [vmem:[%s2] sm:$0x1]
  %v33 = vlaneseq
  %v34 = vshrl.u32 %v33, 7
  %v35 = vsub.s32 0, %v34
  %v36 = vrot.slane %v31, %v35
  %38 = vmatprep.subr.mxu0 0.0
  %39 = vmatpush1.msra.mxu0 %v15
  %40 = vmatprep.subr.mxu0 0.0
  %41 = vmatpush1.msra.mxu0 %v16
  %42 = vmatprep.subr.mxu0 0.0
  %43 = vmatpush1.msra.mxu0 %v17
  %44 = vmatprep.subr.mxu0 0.0
  %45 = vmatpush1.msra.mxu0 %v18
  %46 = vmatprep.subr.mxu0 0.0
  %47 = vmatpush1.msra.mxu0 %v19
  %48 = vmatprep.subr.mxu0 0.0
  %49 = vmatpush1.msra.mxu0 %v20
  %50 = vmatprep.subr.mxu0 0.0
  %51 = vmatpush1.msra.mxu0 %v21
  %52 = vmatprep.subr.mxu0 0.0
  %53 = vmatpush1.msra.mxu0 %v22
  %54 = vmatprep.subr.mxu0 0.0
  %55 = vmatpush1.msra.mxu0 %v23
  %56 = vmatprep.subr.mxu0 0.0
  %57 = vmatpush1.msra.mxu0 %v24
  %58 = vmatprep.subr.mxu0 0.0
  %59 = vmatpush1.msra.mxu0 %v25
  %60 = vmatprep.subr.mxu0 0.0
  %61 = vmatpush1.msra.mxu0 %v26
  %62 = vmatprep.subr.mxu0 0.0
  %63 = vmatpush1.msra.mxu0 %v27
  %64 = vmatprep.subr.mxu0 0.0
  %65 = vmatpush1.msra.mxu0 %v28
  %66 = vmatprep.subr.mxu0 0.0
  %67 = vmatpush1.msra.mxu0 %v29
  %68 = vmatprep.subr.mxu0 0.0
  %69 = vmatpush1.msra.mxu0 %v30
  %70 = vmatprep.subr.mxu0 0.0
  %71 = vmatpush1.msra.mxu0 0.0
  %72 = vmatprep.subr.mxu0 0.0
  %73 = vmatpush1.msra.mxu0 0.0
  %74 = vmatprep.subr.mxu0 0.0
  %75 = vmatpush1.msra.mxu0 0.0
  %76 = vmatprep.subr.mxu0 0.0
  %77 = vmatpush1.msra.mxu0 0.0
  %78 = vmatprep.subr.mxu0 0.0
  %79 = vmatpush1.msra.mxu0 0.0
  %80 = vmatprep.subr.mxu0 0.0
  %81 = vmatpush1.msra.mxu0 0.0
  %82 = vmatprep.subr.mxu0 0.0
  %83 = vmatpush1.msra.mxu0 0.0
  %84 = vmatprep.subr.mxu0 0.0
  %85 = vmatpush1.msra.mxu0 0.0
  %86 = vmatprep.subr.mxu0 0.0
  %87 = vmatpush1.msra.mxu0 0.0
  %88 = vmatprep.subr.mxu0 0.0
  %89 = vmatpush1.msra.mxu0 0.0
  %90 = vmatprep.subr.mxu0 0.0
  %91 = vmatpush1.msra.mxu0 0.0
  %92 = vmatprep.subr.mxu0 0.0
  %93 = vmatpush1.msra.mxu0 0.0
  %94 = vmatprep.subr.mxu0 0.0
  %95 = vmatpush1.msra.mxu0 0.0
  %96 = vmatprep.subr.mxu0 0.0
  %97 = vmatpush1.msra.mxu0 0.0
  %98 = vmatprep.subr.mxu0 0.0
  %99 = vmatpush1.msra.mxu0 0.0
  %100 = vmatprep.subr.mxu0 0.0
  %101 = vmatpush1.msra.mxu0 0.0
  %102 = vmatprep.mubr.f32.mxu0 0.0
  %103 = vmatmul.mubr.f32.gmra.mrb[0].mxu0 %v14
  %v104 = vpop.f32.mrb[0].mxu0
  %v105 = vadd.f32 %v36, %v104
  %v106 = vpop.f32.mrb[0].mxu0
  %107 = vdwg.mxu0
  %108 = vst [vmem:[%s3] sm:$0xff] %v105
  // Predicated region
  $region14: #{cross_modal_attention.1} parent=0 // pred_check
    _
  $region15: #{cross_modal_attention.1} parent=0 // pred_check_branch
    %110 = sbr.rel (0) target = $region17
  $region16: #{cross_modal_attention.1} parent=0 // pred_region
    _
  $region17: #{cross_modal_attention.1} parent=0 // pred_fallthru
    _
  // Predicated region
  $region18: #{cross_modal_attention.1} parent=0 // pred_check
    _
  $region19: #{cross_modal_attention.1} parent=0 // pred_check_branch
    %112 = sbr.rel (0) target = $region21
  $region20: #{cross_modal_attention.1} parent=0 // pred_region
    _
  $region21: #{cross_modal_attention.1} parent=0 // pred_fallthru
    _

</llo_original>
